<compile_context>
chip_gen: v7x
topology: tpu7x:2x2x1
jax: 0.10.0
libtpu: 0.0.40
codegen_flags: <defaults>
</compile_context>

<pallas_src>
import functools

import jax
import jax.numpy as jnp
from jax.experimental import pallas as pl
from jax.experimental.pallas import tpu as pltpu

LN_EPS = 1e-5
LANE = 128
SUBLANE = 8

# Batch-tile candidates: multiples of 16 (bf16 sublane packing), descending.
_TILE_CANDIDATES = (512, 256, 128, 64, 32, 16)


def _round_up(x, m):
    return (x + m - 1) // m * m


# -----------------------------------------------------------------------------
# Fused whole-MLP kernel (one batch tile per grid step)
# -----------------------------------------------------------------------------
def _fused_mlp_kernel(hidden_true_dims, x_ref, *refs):
    """refs = [w0, bgb0, w1, bgb1, ..., w_final, b_final, o_ref].

    bgb_l is an (8, N) fp32 slab: row 0 = bias, row 1 = gamma, row 2 = beta.
    Activations stay in VMEM/vregs across layers.  Padded feature lanes are
    kept exactly zero (zero weight columns + zero bias/gamma/beta), so the
    unmasked LayerNorm sums below equal the true-width sums.
    """
    o_ref = refs[-1]
    prefs = refs[:-1]

    h = x_ref[...]  # (TILE_M, K0p) bf16; padded lanes/rows are zero
    idx = 0
    for n_true in hidden_true_dims:
        w_ref, bgb_ref = prefs[idx], prefs[idx + 1]
        idx += 2
        bias = bgb_ref[0:1, :]
        gamma = bgb_ref[1:2, :]
        beta = bgb_ref[2:3, :]
        # Linear: bf16 operands on the MXU, fp32 accumulation.
        y = jnp.dot(h, w_ref[...], preferred_element_type=jnp.float32) + bias
        # LayerNorm over the *true* width.  Padded lanes of y are exactly zero,
        # so plain sums are correct and no iota/where mask is needed; gamma and
        # beta are zero in padded lanes, which re-zeroes them after centering.
        # NOTE: zero-padded batch rows get var ~ 0 -> rsqrt(var+eps) is large
        # but finite; those rows are sliced away by the wrapper (benign).
        inv_n = jnp.float32(1.0 / n_true)
        mean = jnp.sum(y, axis=-1, keepdims=True) * inv_n
        var = jnp.sum(y * y, axis=-1, keepdims=True) * inv_n - mean * mean
        y = (y - mean) * jax.lax.rsqrt(var + LN_EPS) * gamma + beta
        # ReLU.  Dropout(p=0.05) is identity at inference (eval mode).
        h = jnp.maximum(y, 0.0).astype(jnp.bfloat16)

    w_ref, b_ref = prefs[idx], prefs[idx + 1]
    out = jnp.dot(h, w_ref[...], preferred_element_type=jnp.float32) + b_ref[0:1, :]
    o_ref[...] = out.astype(o_ref.dtype)


# -----------------------------------------------------------------------------
# Parameters (PyTorch-like init) + lane-dense / bf16 / packed preparation
# -----------------------------------------------------------------------------
def init_mlp_params(key, input_dim, hidden_dims, out_dim):
    params = {"hidden": [], "final": None}
    dims = [input_dim] + list(hidden_dims)
    for in_size, out_size in zip(dims, hidden_dims):
        key, kw, kb = jax.random.split(key, 3)
        bound = 1.0 / (in_size ** 0.5)
        w = jax.random.uniform(kw, (in_size, out_size), jnp.float32, -bound, bound)
        b = jax.random.uniform(kb, (1, out_size), jnp.float32, -bound, bound)
        g = jnp.ones((1, out_size), jnp.float32)
        beta = jnp.zeros((1, out_size), jnp.float32)
        params["hidden"].append((w, b, g, beta))
    key, kw, kb = jax.random.split(key, 3)
    in_size = hidden_dims[-1]
    bound = 1.0 / (in_size ** 0.5)
    w = jax.random.uniform(kw, (in_size, out_dim), jnp.float32, -bound, bound)
    b = jax.random.uniform(kb, (1, out_dim), jnp.float32, -bound, bound)
    params["final"] = (w, b)
    return params


def _pad2(a, rows, cols, dtype):
    out = jnp.zeros((rows, cols), dtype)
    return out.at[: a.shape[0], : a.shape[1]].set(a.astype(dtype))


def _pack_rows(rows, ncols):
    """Pack 1-row vectors into a single (8, ncols) fp32 slab (unused rows zero).

    A (1, N) fp32 input pads to 8 sublanes in VMEM anyway, so packing
    bias/gamma/beta into one slab turns 3 DMAs + 3 pipeline buffers into 1.
    """
    out = jnp.zeros((SUBLANE, ncols), jnp.float32)
    for r, a in enumerate(rows):
        v = a.reshape(-1).astype(jnp.float32)
        out = out.at[r, : v.shape[0]].set(v)
    return out


def prepare_padded_params(params, lane_multiple=LANE):
    """Pad feature dims to `lane_multiple`, cast weights to bf16, pack b/g/beta.

    TODO(synk): on v6e/v7x (256-wide MXU) pad true dims > 128 to multiples of
    256 to keep every MXU push full-width (keep 128 on v5e).
    """
    padded = {"hidden": [], "final": None}
    for (w, b, g, beta) in params["hidden"]:
        kin_p = _round_up(w.shape[0], lane_multiple)
        kout_p = _round_up(w.shape[1], lane_multiple)
        padded["hidden"].append((
            _pad2(w, kin_p, kout_p, jnp.bfloat16),
            _pack_rows([b, g, beta], kout_p),
        ))
    w, b = params["final"]
    kin_p = _round_up(w.shape[0], lane_multiple)
    kout_p = _round_up(w.shape[1], lane_multiple)
    padded["final"] = (_pad2(w, kin_p, kout_p, jnp.bfloat16),
                       _pack_rows([b], kout_p))
    return padded


# -----------------------------------------------------------------------------
# Sizing heuristics
# -----------------------------------------------------------------------------
def _vmem_budget_bytes():
    """~75% of this chip's physical VMEM (128 MiB v5e/v6e, 64 MiB v7x)."""
    try:
        cap = int(pltpu.get_tpu_info().vmem_capacity_bytes)
    except Exception:
        cap = 64 << 20  # conservative fallback (v7x physical size)
    return (cap * 3) // 4


def _vmem_estimate(tm, dims_p, param_bytes):
    """Rough VMEM plan: single-buffered params, double-buffered x (bf16) and
    out (fp32) tiles, plus fp32 working temporaries for the unrolled layers."""
    k0p, np_out = dims_p[0], dims_p[-1]
    max_d = max(dims_p)
    act = 2 * tm * k0p * 2 + 2 * tm * np_out * 4
    work = 6 * tm * max_d * 4  # generous: unrolled chain keeps several temps live
    return param_bytes + act + work


def _choose_tile(batch, tile_cap):
    """Pick (tm, padded_rows): minimise zero-row waste, prefer larger tiles,
    and keep >= 2 grid steps when batch allows so both v7x TensorCores work."""
    mp8 = _round_up(max(batch, SUBLANE), SUBLANE)
    valid = [t for t in _TILE_CANDIDATES
             if t <= tile_cap and not (mp8 >= 16 and t > mp8 // 2)]
    if not valid:
        return mp8, mp8  # single whole-batch tile (tiny batch)
    wastes = {t: _round_up(mp8, t) - batch for t in valid}
    min_w = min(wastes.values())
    slack = max(SUBLANE, batch // 8)
    for t in valid:  # descending order
        if wastes[t] <= min_w + slack:
            return t, _round_up(mp8, t)
    t = valid[-1]
    return t, _round_up(mp8, t)


def _param_block_spec(shape):
    """Grid-invariant parameter block: single pipeline buffer (no point double
    buffering a block whose index never changes; halves param VMEM residency)."""
    index_map = lambda i: (0, 0)
    try:
        return pl.BlockSpec(shape, index_map, pipeline_mode=pl.Buffered(1))
    except Exception:  # older JAX without pipeline_mode / Buffered
        return pl.BlockSpec(shape, index_map)


# -----------------------------------------------------------------------------
# Forward wrapper: batch-tiled grid, single fused pallas_call
# -----------------------------------------------------------------------------
def make_mlp_forward(hidden_dims, out_dim, tile_m=512):
    hidden_dims = tuple(int(d) for d in hidden_dims)
    kernel = functools.partial(_fused_mlp_kernel, hidden_dims)

    @jax.jit
    def forward(padded_params, *inputs):
        # torch.cat(inputs, dim=-1)
        x = jnp.concatenate(inputs, axis=-1)
        batch, in_dim = x.shape

        k0p = padded_params["hidden"][0][0].shape[0]
        np_out = padded_params["final"][0].shape[1]
        dims_p = [k0p] + [p[0].shape[1] for p in padded_params["hidden"]] + [np_out]

        flat_params = []
        for layer in padded_params["hidden"]:
            flat_params.extend(layer)
        flat_params.extend(padded_params["final"])
        param_bytes = sum(int(a.size) * a.dtype.itemsize for a in flat_params)

        # Generation-aware VMEM budget; shrink the batch tile if the plan
        # overflows (matters on v7x's 64 MiB physical VMEM).
        vmem_cap = _vmem_budget_bytes()
        tile_cap = tile_m
        while tile_cap > 64 and _vmem_estimate(tile_cap, dims_p, param_bytes) > vmem_cap:
            tile_cap //= 2
        tm, mp = _choose_tile(batch, tile_cap)
        grid = (mp // tm,)

        # Pad + cast x to bf16 before the call (it is a bf16 MXU operand
        # in-kernel anyway); padded rows/lanes are zero.
        # TODO(synk): fuse the concat/pad fully into the kernel (per-input
        # BlockSpecs + row-sliced dots against W0) to drop this HBM round trip.
        xp = jnp.zeros((mp, k0p), jnp.bfloat16).at[:batch, :in_dim].set(
            x.astype(jnp.bfloat16))

        in_specs = [pl.BlockSpec((tm, k0p), lambda i: (i, 0))]
        for a in flat_params:
            in_specs.append(_param_block_spec(a.shape))
        out_specs = pl.BlockSpec((tm, np_out), lambda i: (i, 0))

        # Advisory cost estimate for the XLA scheduler.
        flops = 2 * mp * sum(a * b for a, b in zip(dims_p[:-1], dims_p[1:]))
        bytes_accessed = int(xp.size) * 2 + param_bytes + mp * np_out * 4
        cost = pl.CostEstimate(flops=int(flops),
                               transcendentals=int(mp * len(hidden_dims)),
                               bytes_accessed=int(bytes_accessed))

        vmem_limit = int(min(
            max(int(1.5 * _vmem_estimate(tm, dims_p, param_bytes)), 16 << 20),
            vmem_cap))

        out_p = pl.pallas_call(
            kernel,
            out_shape=jax.ShapeDtypeStruct((mp, np_out), jnp.float32),
            grid=grid,
            in_specs=in_specs,
            out_specs=out_specs,
            compiler_params=pltpu.CompilerParams(
                dimension_semantics=("parallel",),
                vmem_limit_bytes=vmem_limit,
            ),
            cost_estimate=cost,
        )(xp, *flat_params)

        return out_p[:batch, :out_dim]

    return forward


# -----------------------------------------------------------------------------
# Pure-JAX reference (same bf16 operand rounding, fp32 accumulation)
# -----------------------------------------------------------------------------
def mlp_reference(params, *inputs):
    x = jnp.concatenate(inputs, axis=-1).astype(jnp.float32)
    for (w, b, g, beta) in params["hidden"]:
        y = jnp.dot(x.astype(jnp.bfloat16), w.astype(jnp.bfloat16),
                    preferred_element_type=jnp.float32) + b
        mean = jnp.mean(y, axis=-1, keepdims=True)
        var = jnp.mean((y - mean) ** 2, axis=-1, keepdims=True)
        y = (y - mean) * jax.lax.rsqrt(var + LN_EPS) * g + beta
        x = jnp.maximum(y, 0.0)
    w, b = params["final"]
    return jnp.dot(x.astype(jnp.bfloat16), w.astype(jnp.bfloat16),
                   preferred_element_type=jnp.float32) + b


if __name__ == "__main__":
    # Small deterministic example: two inputs concatenated -> input_dim = 32
    batch = 2
    in_dims = (16, 16)
    input_dim = sum(in_dims)
    hidden_dims = (32, 32)
    out_dim = 8

    key = jax.random.PRNGKey(0)
    key, k1, k2, kp = jax.random.split(key, 4)
    x1 = jax.random.normal(k1, (batch, in_dims[0]), jnp.float32)
    x2 = jax.random.normal(k2, (batch, in_dims[1]), jnp.float32)

    params = init_mlp_params(kp, input_dim, list(hidden_dims), out_dim)
    padded_params = prepare_padded_params(params)

    forward = make_mlp_forward(hidden_dims, out_dim)
    out = jax.block_until_ready(forward(padded_params, x1, x2))

    ref = mlp_reference(params, x1, x2)
    assert out.shape == (batch, out_dim)
    max_err = float(jnp.max(jnp.abs(out - ref)))
    assert jnp.allclose(out, ref, atol=2e-3, rtol=2e-3), (
        f"mismatch vs reference (max abs err = {max_err:.3e})")

    print("KERNEL_OK")
</pallas_src>

<mosaic_0001>
module attributes {stable_mosaic.version = 11 : i64} {
  func.func @_fused_mlp_kernel(%arg0: i32, %arg1: memref<16x128xbf16, #tpu.memory_space<vmem>>, %arg2: memref<128x128xbf16, #tpu.memory_space<vmem>>, %arg3: memref<8x128xf32, #tpu.memory_space<vmem>>, %arg4: memref<128x128xbf16, #tpu.memory_space<vmem>>, %arg5: memref<8x128xf32, #tpu.memory_space<vmem>>, %arg6: memref<128x128xbf16, #tpu.memory_space<vmem>>, %arg7: memref<8x128xf32, #tpu.memory_space<vmem>>, %arg8: memref<16x128xf32, #tpu.memory_space<vmem>>) attributes {dimension_semantics = [#tpu.dimension_semantics<parallel>], iteration_bounds = array<i64: 1>, scalar_prefetch = 0 : i64, scratch_operands = 0 : i64, tpu.core_type = #tpu.core_type<tc>, window_params = [{transform_indices = @transform_0, window_bounds = array<i64: 16, 128>}, {pipeline_mode = #tpu.pipeline_mode<synchronous>, transform_indices = @transform_1, window_bounds = array<i64: 128, 128>}, {pipeline_mode = #tpu.pipeline_mode<synchronous>, transform_indices = @transform_2, window_bounds = array<i64: 8, 128>}, {pipeline_mode = #tpu.pipeline_mode<synchronous>, transform_indices = @transform_3, window_bounds = array<i64: 128, 128>}, {pipeline_mode = #tpu.pipeline_mode<synchronous>, transform_indices = @transform_4, window_bounds = array<i64: 8, 128>}, {pipeline_mode = #tpu.pipeline_mode<synchronous>, transform_indices = @transform_5, window_bounds = array<i64: 128, 128>}, {pipeline_mode = #tpu.pipeline_mode<synchronous>, transform_indices = @transform_6, window_bounds = array<i64: 8, 128>}, {transform_indices = @transform_7, window_bounds = array<i64: 16, 128>}]} {
    %c0 = arith.constant 0 : index
    %c0_0 = arith.constant 0 : index
    %0 = vector.load %arg1[%c0, %c0_0] : memref<16x128xbf16, #tpu.memory_space<vmem>>, vector<16x128xbf16>
    %c0_1 = arith.constant 0 : index
    %c0_2 = arith.constant 0 : index
    %1 = vector.load %arg3[%c0_1, %c0_2] : memref<8x128xf32, #tpu.memory_space<vmem>>, vector<1x128xf32>
    %c1 = arith.constant 1 : index
    %c0_3 = arith.constant 0 : index
    %2 = vector.load %arg3[%c1, %c0_3] : memref<8x128xf32, #tpu.memory_space<vmem>>, vector<1x128xf32>
    %c2 = arith.constant 2 : index
    %c0_4 = arith.constant 0 : index
    %3 = vector.load %arg3[%c2, %c0_4] : memref<8x128xf32, #tpu.memory_space<vmem>>, vector<1x128xf32>
    %c0_5 = arith.constant 0 : index
    %c0_6 = arith.constant 0 : index
    %4 = vector.load %arg2[%c0_5, %c0_6] : memref<128x128xbf16, #tpu.memory_space<vmem>>, vector<128x128xbf16>
    %cst = arith.constant dense<0.000000e+00> : vector<16x128xf32>
    %5 = tpu.matmul %0, %4, %cst {dimension_numbers = #tpu.dot_dimension_numbers<[1], [0], [0], [1], [0, 0, 1, 1], [], []>} : vector<16x128xbf16>, vector<128x128xbf16>, vector<16x128xf32> -> vector<16x128xf32>
    %6 = vector.broadcast %1 : vector<1x128xf32> to vector<16x128xf32>
    %7 = arith.addf %5, %6 : vector<16x128xf32>
    %cst_7 = arith.constant dense<0.000000e+00> : vector<16xf32>
    %8 = vector.multi_reduction <add>, %7, %cst_7 [1] : vector<16x128xf32> to vector<16xf32>
    %9 = vector.shape_cast %8 : vector<16xf32> to vector<16x1xf32>
    %cst_8 = arith.constant 3.125000e-02 : f32
    %10 = vector.broadcast %cst_8 : f32 to vector<16x1xf32>
    %11 = arith.mulf %9, %10 : vector<16x1xf32>
    %12 = arith.mulf %7, %7 : vector<16x128xf32>
    %cst_9 = arith.constant dense<0.000000e+00> : vector<16xf32>
    %13 = vector.multi_reduction <add>, %12, %cst_9 [1] : vector<16x128xf32> to vector<16xf32>
    %14 = vector.shape_cast %13 : vector<16xf32> to vector<16x1xf32>
    %cst_10 = arith.constant 3.125000e-02 : f32
    %15 = vector.broadcast %cst_10 : f32 to vector<16x1xf32>
    %16 = arith.mulf %14, %15 : vector<16x1xf32>
    %17 = arith.mulf %11, %11 : vector<16x1xf32>
    %18 = arith.subf %16, %17 : vector<16x1xf32>
    %19 = vector.broadcast %11 : vector<16x1xf32> to vector<16x128xf32>
    %20 = arith.subf %7, %19 : vector<16x128xf32>
    %cst_11 = arith.constant 9.99999974E-6 : f32
    %21 = vector.broadcast %cst_11 : f32 to vector<16x1xf32>
    %22 = arith.addf %18, %21 : vector<16x1xf32>
    %23 = math.rsqrt %22 : vector<16x1xf32>
    %24 = vector.broadcast %23 : vector<16x1xf32> to vector<16x128xf32>
    %25 = arith.mulf %20, %24 : vector<16x128xf32>
    %26 = vector.broadcast %2 : vector<1x128xf32> to vector<16x128xf32>
    %27 = arith.mulf %25, %26 : vector<16x128xf32>
    %28 = vector.broadcast %3 : vector<1x128xf32> to vector<16x128xf32>
    %29 = arith.addf %27, %28 : vector<16x128xf32>
    %cst_12 = arith.constant 0.000000e+00 : f32
    %30 = vector.broadcast %cst_12 : f32 to vector<16x128xf32>
    %31 = arith.maximumf %29, %30 : vector<16x128xf32>
    %32 = arith.truncf %31 : vector<16x128xf32> to vector<16x128xbf16>
    %c0_13 = arith.constant 0 : index
    %c0_14 = arith.constant 0 : index
    %33 = vector.load %arg5[%c0_13, %c0_14] : memref<8x128xf32, #tpu.memory_space<vmem>>, vector<1x128xf32>
    %c1_15 = arith.constant 1 : index
    %c0_16 = arith.constant 0 : index
    %34 = vector.load %arg5[%c1_15, %c0_16] : memref<8x128xf32, #tpu.memory_space<vmem>>, vector<1x128xf32>
    %c2_17 = arith.constant 2 : index
    %c0_18 = arith.constant 0 : index
    %35 = vector.load %arg5[%c2_17, %c0_18] : memref<8x128xf32, #tpu.memory_space<vmem>>, vector<1x128xf32>
    %c0_19 = arith.constant 0 : index
    %c0_20 = arith.constant 0 : index
    %36 = vector.load %arg4[%c0_19, %c0_20] : memref<128x128xbf16, #tpu.memory_space<vmem>>, vector<128x128xbf16>
    %cst_21 = arith.constant dense<0.000000e+00> : vector<16x128xf32>
    %37 = tpu.matmul %32, %36, %cst_21 {dimension_numbers = #tpu.dot_dimension_numbers<[1], [0], [0], [1], [0, 0, 1, 1], [], []>} : vector<16x128xbf16>, vector<128x128xbf16>, vector<16x128xf32> -> vector<16x128xf32>
    %38 = vector.broadcast %33 : vector<1x128xf32> to vector<16x128xf32>
    %39 = arith.addf %37, %38 : vector<16x128xf32>
    %cst_22 = arith.constant dense<0.000000e+00> : vector<16xf32>
    %40 = vector.multi_reduction <add>, %39, %cst_22 [1] : vector<16x128xf32> to vector<16xf32>
    %41 = vector.shape_cast %40 : vector<16xf32> to vector<16x1xf32>
    %cst_23 = arith.constant 3.125000e-02 : f32
    %42 = vector.broadcast %cst_23 : f32 to vector<16x1xf32>
    %43 = arith.mulf %41, %42 : vector<16x1xf32>
    %44 = arith.mulf %39, %39 : vector<16x128xf32>
    %cst_24 = arith.constant dense<0.000000e+00> : vector<16xf32>
    %45 = vector.multi_reduction <add>, %44, %cst_24 [1] : vector<16x128xf32> to vector<16xf32>
    %46 = vector.shape_cast %45 : vector<16xf32> to vector<16x1xf32>
    %cst_25 = arith.constant 3.125000e-02 : f32
    %47 = vector.broadcast %cst_25 : f32 to vector<16x1xf32>
    %48 = arith.mulf %46, %47 : vector<16x1xf32>
    %49 = arith.mulf %43, %43 : vector<16x1xf32>
    %50 = arith.subf %48, %49 : vector<16x1xf32>
    %51 = vector.broadcast %43 : vector<16x1xf32> to vector<16x128xf32>
    %52 = arith.subf %39, %51 : vector<16x128xf32>
    %cst_26 = arith.constant 9.99999974E-6 : f32
    %53 = vector.broadcast %cst_26 : f32 to vector<16x1xf32>
    %54 = arith.addf %50, %53 : vector<16x1xf32>
    %55 = math.rsqrt %54 : vector<16x1xf32>
    %56 = vector.broadcast %55 : vector<16x1xf32> to vector<16x128xf32>
    %57 = arith.mulf %52, %56 : vector<16x128xf32>
    %58 = vector.broadcast %34 : vector<1x128xf32> to vector<16x128xf32>
    %59 = arith.mulf %57, %58 : vector<16x128xf32>
    %60 = vector.broadcast %35 : vector<1x128xf32> to vector<16x128xf32>
    %61 = arith.addf %59, %60 : vector<16x128xf32>
    %cst_27 = arith.constant 0.000000e+00 : f32
    %62 = vector.broadcast %cst_27 : f32 to vector<16x128xf32>
    %63 = arith.maximumf %61, %62 : vector<16x128xf32>
    %64 = arith.truncf %63 : vector<16x128xf32> to vector<16x128xbf16>
    %c0_28 = arith.constant 0 : index
    %c0_29 = arith.constant 0 : index
    %65 = vector.load %arg6[%c0_28, %c0_29] : memref<128x128xbf16, #tpu.memory_space<vmem>>, vector<128x128xbf16>
    %cst_30 = arith.constant dense<0.000000e+00> : vector<16x128xf32>
    %66 = tpu.matmul %64, %65, %cst_30 {dimension_numbers = #tpu.dot_dimension_numbers<[1], [0], [0], [1], [0, 0, 1, 1], [], []>} : vector<16x128xbf16>, vector<128x128xbf16>, vector<16x128xf32> -> vector<16x128xf32>
    %c0_31 = arith.constant 0 : index
    %c0_32 = arith.constant 0 : index
    %67 = vector.load %arg7[%c0_31, %c0_32] : memref<8x128xf32, #tpu.memory_space<vmem>>, vector<1x128xf32>
    %68 = vector.broadcast %67 : vector<1x128xf32> to vector<16x128xf32>
    %69 = arith.addf %66, %68 : vector<16x128xf32>
    %c0_33 = arith.constant 0 : index
    %c0_34 = arith.constant 0 : index
    %70 = vector.load %arg8[%c0_33, %c0_34] : memref<16x128xf32, #tpu.memory_space<vmem>>, vector<16x128xf32>
    tpu.vector_store %arg8[%c0_33, %c0_34], %69 {strides = array<i32>} : memref<16x128xf32, #tpu.memory_space<vmem>>, vector<16x128xf32>,
    return
  }
  func.func @transform_0(%arg0: i32) -> (i32, i32) {
    %c0_i32 = arith.constant 0 : i32
    %c0_i32_0 = arith.constant 0 : i32
    return %arg0, %c0_i32 : i32, i32
  }
  func.func @transform_1(%arg0: i32) -> (i32, i32) {
    %c0_i32 = arith.constant 0 : i32
    %c0_i32_0 = arith.constant 0 : i32
    %c0_i32_1 = arith.constant 0 : i32
    return %c0_i32, %c0_i32_0 : i32, i32
  }
  func.func @transform_2(%arg0: i32) -> (i32, i32) {
    %c0_i32 = arith.constant 0 : i32
    %c0_i32_0 = arith.constant 0 : i32
    %c0_i32_1 = arith.constant 0 : i32
    return %c0_i32, %c0_i32_0 : i32, i32
  }
  func.func @transform_3(%arg0: i32) -> (i32, i32) {
    %c0_i32 = arith.constant 0 : i32
    %c0_i32_0 = arith.constant 0 : i32
    %c0_i32_1 = arith.constant 0 : i32
    return %c0_i32, %c0_i32_0 : i32, i32
  }
  func.func @transform_4(%arg0: i32) -> (i32, i32) {
    %c0_i32 = arith.constant 0 : i32
    %c0_i32_0 = arith.constant 0 : i32
    %c0_i32_1 = arith.constant 0 : i32
    return %c0_i32, %c0_i32_0 : i32, i32
  }
  func.func @transform_5(%arg0: i32) -> (i32, i32) {
    %c0_i32 = arith.constant 0 : i32
    %c0_i32_0 = arith.constant 0 : i32
    %c0_i32_1 = arith.constant 0 : i32
    return %c0_i32, %c0_i32_0 : i32, i32
  }
  func.func @transform_6(%arg0: i32) -> (i32, i32) {
    %c0_i32 = arith.constant 0 : i32
    %c0_i32_0 = arith.constant 0 : i32
    %c0_i32_1 = arith.constant 0 : i32
    return %c0_i32, %c0_i32_0 : i32, i32
  }
  func.func @transform_7(%arg0: i32) -> (i32, i32) {
    %c0_i32 = arith.constant 0 : i32
    %c0_i32_0 = arith.constant 0 : i32
    return %arg0, %c0_i32 : i32, i32
  }
}

</mosaic_0001>

<llo_original>
// kernel: forward.1
$region0: #{forward.1}
  #allocation0 [shape = 'u32[]', space=smem, size = 0x4, offset = 0x4, fixed_abs, tag = 'smem constant byte address 0x4 - core index']
  #allocation1 [shape = 'u32[144,128]{1,0:T(1,128)}', space=vmem, size = 0x12000, scoped, tag = 'internal scratch']
  %s0 = inlined_call_operand.vmem [shape: bf16[16,128], index: 0, kind: input, shape index: {}]
  %s1 = inlined_call_operand.hbm [shape: bf16[128,128], index: 1, kind: input, shape index: {}]
  %s2 = inlined_call_operand.vmem [shape: f32[8,128], index: 2, kind: input, shape index: {}]
  %s3 = inlined_call_operand.hbm [shape: bf16[128,128], index: 3, kind: input, shape index: {}]
  %s4 = inlined_call_operand.vmem [shape: f32[8,128], index: 4, kind: input, shape index: {}]
  %s5 = inlined_call_operand.hbm [shape: bf16[128,128], index: 5, kind: input, shape index: {}]
  %s6 = inlined_call_operand.hbm [shape: f32[8,128], index: 6, kind: input, shape index: {}]
  %s7 = inlined_call_operand.vmem [shape: f32[16,128], index: 7, kind: output, shape index: {}]
  %s8 = sld [smem:[#allocation0]]
  $region54: #{forward.1} parent=0
    _
  %s10 = ssub.s32 1, %s8
  %s11 = scalar_select 0, %s10, %s8
  $region1: #{forward.1} parent=0
    #allocation2 [shape = 'u8[32768]{0}', space=vmem, size = 0x8000, scoped, tag = 'input window, operand 1, single buffered']
    #allocation3 [shape = 's32[1]{0}', space=sflag, size = 0x4, scoped, tag = 'scoped memory for forward.1']
    #allocation4 [shape = 'u8[32768]{0}', space=vmem, size = 0x8000, scoped, tag = 'input window, operand 3, single buffered']
    #allocation5 [shape = 's32[1]{0}', space=sflag, size = 0x4, scoped, tag = 'scoped memory for forward.1']
    #allocation6 [shape = 'u8[32768]{0}', space=vmem, size = 0x8000, scoped, tag = 'input window, operand 5, single buffered']
    #allocation7 [shape = 'u8[4096]{0}', space=vmem, size = 0x1000, scoped, tag = 'input window, operand 6, single buffered']
    #allocation8 [shape = 's32[1]{0}', space=sflag, size = 0x4, scoped, tag = 'scoped memory for forward.1']
    %12 = vsyncpa [#allocation3], 0
    %13 = vsyncpa [#allocation5], 0
    %14 = vsyncpa [#allocation8], 0
    // Predicated region
    $region2: #{forward.1} parent=1 // pred_check
      _
    $region3: #{forward.1} parent=1 // pred_check_branch
      %16 = sbr.rel (0) target = $region5
    $region4: #{forward.1} parent=1 // pred_region
      _
    $region5: #{forward.1} parent=1 // pred_fallthru
      _
    // Predicated region
    $region6: #{forward.1} parent=1 // pred_check
      _
    $region7: #{forward.1} parent=1 // pred_check_branch
      %18 = sbr.rel (0) target = $region9
    $region8: #{forward.1} parent=1 // pred_region
      %s20 = ssub.s32 1024, 1024
      %21 = vsyncadd [#allocation3], %s20
      %s22 = sshll.u32 [#allocation2], 4
      %s23 = int_to_ptr.vmem [resolvable:$true] %s22
      %28 = dma.hbm_to_vmem [thread:$0]  %s1, 1024, %s23, [#allocation3], 64, 64, 4
    $region9: #{forward.1} parent=1 // pred_fallthru
      _
    // Predicated region
    $region10: #{forward.1} parent=1 // pred_check
      _
    $region11: #{forward.1} parent=1 // pred_check_branch
      %30 = sbr.rel (0) target = $region13
    $region12: #{forward.1} parent=1 // pred_region
      _
    $region13: #{forward.1} parent=1 // pred_fallthru
      _
    // Predicated region
    $region14: #{forward.1} parent=1 // pred_check
      _
    $region15: #{forward.1} parent=1 // pred_check_branch
      %32 = sbr.rel (0) target = $region17
    $region16: #{forward.1} parent=1 // pred_region
      %s34 = ssub.s32 1024, 1024
      %35 = vsyncadd [#allocation5], %s34
      %s36 = sshll.u32 [#allocation4], 4
      %s37 = int_to_ptr.vmem [resolvable:$true] %s36
      %42 = dma.hbm_to_vmem [thread:$0]  %s3, 1024, %s37, [#allocation5], 64, 64, 4
    $region17: #{forward.1} parent=1 // pred_fallthru
      _
    // Predicated region
    $region18: #{forward.1} parent=1 // pred_check
      _
    $region19: #{forward.1} parent=1 // pred_check_branch
      %44 = sbr.rel (0) target = $region21
    $region20: #{forward.1} parent=1 // pred_region
      _
    $region21: #{forward.1} parent=1 // pred_fallthru
      _
    // Predicated region
    $region22: #{forward.1} parent=1 // pred_check
      _
    $region23: #{forward.1} parent=1 // pred_check_branch
      %46 = sbr.rel (0) target = $region25
    $region24: #{forward.1} parent=1 // pred_region
      %s48 = ssub.s32 1024, 1024
      %49 = vsyncadd [#allocation5], %s48
      %s50 = sshll.u32 [#allocation6], 4
      %s51 = int_to_ptr.vmem [resolvable:$true] %s50
      %56 = dma.hbm_to_vmem [thread:$0]  %s5, 1024, %s51, [#allocation5], 64, 64, 4
    $region25: #{forward.1} parent=1 // pred_fallthru
      _
    // Predicated region
    $region26: #{forward.1} parent=1 // pred_check
      _
    $region27: #{forward.1} parent=1 // pred_check_branch
      %58 = sbr.rel (0) target = $region29
    $region28: #{forward.1} parent=1 // pred_region
      %s60 = ssub.s32 128, 128
      %61 = vsyncadd [#allocation8], %s60
      %s63 = sshll.u32 [#allocation7], 4
      %s64 = int_to_ptr.vmem [resolvable:$true] %s63
      %66 = dma.hbm_to_vmem [thread:$0]  %s6, 128, %s64, [#allocation8]
    $region29: #{forward.1} parent=1 // pred_fallthru
      _
    // Predicated region
    $region30: #{forward.1} parent=1 // pred_check
      _
    $region31: #{forward.1} parent=1 // pred_check_branch
      %68 = sbr.rel (0) target = $region33
    $region32: #{forward.1} parent=1 // pred_region
      %69 = dma.done [#allocation3], 1024
    $region33: #{forward.1} parent=1 // pred_fallthru
      _
    // Predicated region
    $region34: #{forward.1} parent=1 // pred_check
      _
    $region35: #{forward.1} parent=1 // pred_check_branch
      %71 = sbr.rel (0) target = $region37
    $region36: #{forward.1} parent=1 // pred_region
      %72 = dma.done [#allocation5], 1024
    $region37: #{forward.1} parent=1 // pred_fallthru
      _
    // Predicated region
    $region38: #{forward.1} parent=1 // pred_check
      _
    $region39: #{forward.1} parent=1 // pred_check_branch
      %74 = sbr.rel (0) target = $region41
    $region40: #{forward.1} parent=1 // pred_region
      %75 = dma.done [#allocation5], 1024
    $region41: #{forward.1} parent=1 // pred_fallthru
      _
    // Predicated region
    $region42: #{forward.1} parent=1 // pred_check
      _
    $region43: #{forward.1} parent=1 // pred_check_branch
      %77 = sbr.rel (0) target = $region45
    $region44: #{forward.1} parent=1 // pred_region
      %78 = dma.done [#allocation8], 128
    $region45: #{forward.1} parent=1 // pred_fallthru
      _
    %v80 = vld [vmem:[%s0] sm:$0xf]
    %v81 = vld [vmem:[%s0 + $0x4] sm:$0xf]
    %v82 = vld [vmem:[%s2] sm:$0x1]
    %v83 = vld [vmem:[%s2 + $0x1] sm:$0x1]
    %v84 = vld [vmem:[%s2 + $0x2] sm:$0x1]
    %v85 = vld [vmem:[#allocation2] sm:$0xf]
    %v86 = vld [vmem:[#allocation2 + $0x4] sm:$0xf]
    %v87 = vld [vmem:[#allocation2 + $0x8] sm:$0xf]
    %v88 = vld [vmem:[#allocation2 + $0xc] sm:$0xf]
    %v89 = vld [vmem:[#allocation2 + $0x10] sm:$0xf]
    %v90 = vld [vmem:[#allocation2 + $0x14] sm:$0xf]
    %v91 = vld [vmem:[#allocation2 + $0x18] sm:$0xf]
    %v92 = vld [vmem:[#allocation2 + $0x1c] sm:$0xf]
    %v93 = vld [vmem:[#allocation2 + $0x20] sm:$0xf]
    %v94 = vld [vmem:[#allocation2 + $0x24] sm:$0xf]
    %v95 = vld [vmem:[#allocation2 + $0x28] sm:$0xf]
    %v96 = vld [vmem:[#allocation2 + $0x2c] sm:$0xf]
    %v97 = vld [vmem:[#allocation2 + $0x30] sm:$0xf]
    %v98 = vld [vmem:[#allocation2 + $0x34] sm:$0xf]
    %v99 = vld [vmem:[#allocation2 + $0x38] sm:$0xf]
    %v100 = vld [vmem:[#allocation2 + $0x3c] sm:$0xf]
    %v101 = vlaneseq
    %v102 = vshrl.u32 %v101, 7
    %v103 = vsub.s32 0, %v102
    %v104 = vrot.slane %v82, %v103
    %v107 = vunpack.c.l.b16 %v80
    %v108 = vunpack.c.l.b16 %v81
    %v109 = vpack.c.b16 %v108, %v107
    %v127 = vunpack.c.l.b16 %v85
    %v128 = vunpack.c.l.b16 %v86
    %v129 = vunpack.c.l.b16 %v87
    %v130 = vunpack.c.l.b16 %v88
    %v131 = vunpack.c.l.b16 %v89
    %v132 = vunpack.c.l.b16 %v90
    %v133 = vunpack.c.l.b16 %v91
    %v134 = vunpack.c.l.b16 %v92
    %v135 = vunpack.c.l.b16 %v93
    %v136 = vunpack.c.l.b16 %v94
    %v137 = vunpack.c.l.b16 %v95
    %v138 = vunpack.c.l.b16 %v96
    %v139 = vunpack.c.l.b16 %v97
    %v140 = vunpack.c.l.b16 %v98
    %v141 = vunpack.c.l.b16 %v99
    %v142 = vunpack.c.l.b16 %v100
    %v143 = vpack.c.b16 %v128, %v127
    %v144 = vpack.c.b16 %v130, %v129
    %v145 = vpack.c.b16 %v132, %v131
    %v146 = vpack.c.b16 %v134, %v133
    %v147 = vpack.c.b16 %v136, %v135
    %v148 = vpack.c.b16 %v138, %v137
    %v149 = vpack.c.b16 %v140, %v139
    %v150 = vpack.c.b16 %v142, %v141
    %159 = vmatprep.subr.bf16.mxu0 0
    %160 = vmatpush1.bf16.msra.mxu0 %v143
    %161 = vmatprep.subr.bf16.mxu0 0
    %162 = vmatpush1.bf16.msra.mxu0 %v144
    %163 = vmatprep.subr.bf16.mxu0 0
    %164 = vmatpush1.bf16.msra.mxu0 %v145
    %165 = vmatprep.subr.bf16.mxu0 0
    %166 = vmatpush1.bf16.msra.mxu0 %v146
    %167 = vmatprep.subr.bf16.mxu0 0
    %168 = vmatpush1.bf16.msra.mxu0 %v147
    %169 = vmatprep.subr.bf16.mxu0 0
    %170 = vmatpush1.bf16.msra.mxu0 %v148
    %171 = vmatprep.subr.bf16.mxu0 0
    %172 = vmatpush1.bf16.msra.mxu0 %v149
    %173 = vmatprep.subr.bf16.mxu0 0
    %174 = vmatpush1.bf16.msra.mxu0 %v150
    %175 = vmatprep.subr.bf16.mxu0 0
    %176 = vmatpush1.bf16.msra.mxu0 0
    %177 = vmatprep.subr.bf16.mxu0 0
    %178 = vmatpush1.bf16.msra.mxu0 0
    %179 = vmatprep.subr.bf16.mxu0 0
    %180 = vmatpush1.bf16.msra.mxu0 0
    %181 = vmatprep.subr.bf16.mxu0 0
    %182 = vmatpush1.bf16.msra.mxu0 0
    %183 = vmatprep.subr.bf16.mxu0 0
    %184 = vmatpush1.bf16.msra.mxu0 0
    %185 = vmatprep.subr.bf16.mxu0 0
    %186 = vmatpush1.bf16.msra.mxu0 0
    %187 = vmatprep.subr.bf16.mxu0 0
    %188 = vmatpush1.bf16.msra.mxu0 0
    %189 = vmatprep.subr.bf16.mxu0 0
    %190 = vmatpush1.bf16.msra.mxu0 0
    %191 = vmatprep.mubr.bf16.mxu0 0
    %192 = vmatmul.mubr.bf16.gmra.mrb[0].mxu0 %v109
    %v193 = vpop.f32.mrb[0].mxu0
    %v194 = vadd.f32 %v104, %v193
    %v195 = vpop.f32.mrb[0].mxu0
    %v196 = vpop.f32.mrb[0].mxu0
    %v197 = vadd.f32 %v104, %v196
    %v198 = vpop.f32.mrb[0].mxu0
    %199 = vdwg.mxu0
    %200 = vadd.xlane.f32.xlu0 %v194
    %v201 = vpop.xlane.xlu0 %200
    %202 = vadd.xlane.f32.xlu0 %v197
    %v203 = vpop.xlane.xlu0 %202
    %v204 = vmul.f32 %v201, 0.03125
    %v205 = vmul.f32 %v203, 0.03125
    %v206 = vmul.f32 %v194, %v194
    %v207 = vmul.f32 %v197, %v197
    %208 = vadd.xlane.f32.xlu0 %v206
    %v209 = vpop.xlane.xlu0 %208
    %210 = vadd.xlane.f32.xlu0 %v207
    %v211 = vpop.xlane.xlu0 %210
    %v212 = vmul.f32 %v209, 0.03125
    %v213 = vmul.f32 %v211, 0.03125
    %v214 = vmul.f32 %v204, %v204
    %v215 = vmul.f32 %v205, %v205
    %v216 = vsub.f32 %v212, %v214
    %v217 = vsub.f32 %v213, %v215
    %v218 = vsub.f32 %v194, %v204
    %v219 = vsub.f32 %v197, %v205
    %v220 = vadd.f32 %v216, 1e-05
    %v221 = vadd.f32 %v217, 1e-05
    %v222 = vrsqrt.pop %v220
    %v223 = vrsqrt.pop %v221
    %v224 = vmul.f32 %v218, %v222
    %v225 = vmul.f32 %v219, %v223
    %v226 = vlaneseq
    %v227 = vshrl.u32 %v226, 7
    %v228 = vsub.s32 0, %v227
    %v229 = vrot.slane %v83, %v228
    %v230 = vmul.f32 %v224, %v229
    %v231 = vmul.f32 %v225, %v229
    %v232 = vlaneseq
    %v233 = vshrl.u32 %v232, 7
    %v234 = vsub.s32 0, %v233
    %v235 = vrot.slane %v84, %v234
    %v236 = vadd.f32 %v230, %v235
    %v237 = vadd.f32 %v231, %v235
    %v238 = vmax.f32 %v236, 0.0
    %v239 = vmax.f32 %v237, 0.0
    %v240 = vpack.c.bf16 %v239, %v238
    %v241 = vld [vmem:[%s4] sm:$0x1]
    %v242 = vld [vmem:[%s4 + $0x1] sm:$0x1]
    %v243 = vld [vmem:[%s4 + $0x2] sm:$0x1]
    %v244 = vld [vmem:[#allocation4] sm:$0xf]
    %v245 = vld [vmem:[#allocation4 + $0x4] sm:$0xf]
    %v246 = vld [vmem:[#allocation4 + $0x8] sm:$0xf]
    %v247 = vld [vmem:[#allocation4 + $0xc] sm:$0xf]
    %v248 = vld [vmem:[#allocation4 + $0x10] sm:$0xf]
    %v249 = vld [vmem:[#allocation4 + $0x14] sm:$0xf]
    %v250 = vld [vmem:[#allocation4 + $0x18] sm:$0xf]
    %v251 = vld [vmem:[#allocation4 + $0x1c] sm:$0xf]
    %v252 = vld [vmem:[#allocation4 + $0x20] sm:$0xf]
    %v253 = vld [vmem:[#allocation4 + $0x24] sm:$0xf]
    %v254 = vld [vmem:[#allocation4 + $0x28] sm:$0xf]
    %v255 = vld [vmem:[#allocation4 + $0x2c] sm:$0xf]
    %v256 = vld [vmem:[#allocation4 + $0x30] sm:$0xf]
    %v257 = vld [vmem:[#allocation4 + $0x34] sm:$0xf]
    %v258 = vld [vmem:[#allocation4 + $0x38] sm:$0xf]
    %v259 = vld [vmem:[#allocation4 + $0x3c] sm:$0xf]
    %v260 = vlaneseq
    %v261 = vshrl.u32 %v260, 7
    %v262 = vsub.s32 0, %v261
    %v263 = vrot.slane %v241, %v262
    %v280 = vunpack.c.l.b16 %v244
    %v281 = vunpack.c.l.b16 %v245
    %v282 = vunpack.c.l.b16 %v246
    %v283 = vunpack.c.l.b16 %v247
    %v284 = vunpack.c.l.b16 %v248
    %v285 = vunpack.c.l.b16 %v249
    %v286 = vunpack.c.l.b16 %v250
    %v287 = vunpack.c.l.b16 %v251
    %v288 = vunpack.c.l.b16 %v252
    %v289 = vunpack.c.l.b16 %v253
    %v290 = vunpack.c.l.b16 %v254
    %v291 = vunpack.c.l.b16 %v255
    %v292 = vunpack.c.l.b16 %v256
    %v293 = vunpack.c.l.b16 %v257
    %v294 = vunpack.c.l.b16 %v258
    %v295 = vunpack.c.l.b16 %v259
    %v296 = vpack.c.b16 %v281, %v280
    %v297 = vpack.c.b16 %v283, %v282
    %v298 = vpack.c.b16 %v285, %v284
    %v299 = vpack.c.b16 %v287, %v286
    %v300 = vpack.c.b16 %v289, %v288
    %v301 = vpack.c.b16 %v291, %v290
    %v302 = vpack.c.b16 %v293, %v292
    %v303 = vpack.c.b16 %v295, %v294
    %312 = vmatprep.subr.bf16.mxu0 0
    %313 = vmatpush1.bf16.msra.mxu0 %v296
    %314 = vmatprep.subr.bf16.mxu0 0
    %315 = vmatpush1.bf16.msra.mxu0 %v297
    %316 = vmatprep.subr.bf16.mxu0 0
    %317 = vmatpush1.bf16.msra.mxu0 %v298
    %318 = vmatprep.subr.bf16.mxu0 0
    %319 = vmatpush1.bf16.msra.mxu0 %v299
    %320 = vmatprep.subr.bf16.mxu0 0
    %321 = vmatpush1.bf16.msra.mxu0 %v300
    %322 = vmatprep.subr.bf16.mxu0 0
    %323 = vmatpush1.bf16.msra.mxu0 %v301
    %324 = vmatprep.subr.bf16.mxu0 0
    %325 = vmatpush1.bf16.msra.mxu0 %v302
    %326 = vmatprep.subr.bf16.mxu0 0
    %327 = vmatpush1.bf16.msra.mxu0 %v303
    %328 = vmatprep.subr.bf16.mxu0 0
    %329 = vmatpush1.bf16.msra.mxu0 0
    %330 = vmatprep.subr.bf16.mxu0 0
    %331 = vmatpush1.bf16.msra.mxu0 0
    %332 = vmatprep.subr.bf16.mxu0 0
    %333 = vmatpush1.bf16.msra.mxu0 0
    %334 = vmatprep.subr.bf16.mxu0 0
    %335 = vmatpush1.bf16.msra.mxu0 0
    %336 = vmatprep.subr.bf16.mxu0 0
    %337 = vmatpush1.bf16.msra.mxu0 0
    %338 = vmatprep.subr.bf16.mxu0 0
    %339 = vmatpush1.bf16.msra.mxu0 0
    %340 = vmatprep.subr.bf16.mxu0 0
    %341 = vmatpush1.bf16.msra.mxu0 0
    %342 = vmatprep.subr.bf16.mxu0 0
    %343 = vmatpush1.bf16.msra.mxu0 0
    %344 = vmatprep.mubr.bf16.mxu0 0
    %345 = vmatmul.mubr.bf16.gmra.mrb[0].mxu0 %v240
    %v346 = vpop.f32.mrb[0].mxu0
    %v347 = vadd.f32 %v263, %v346
    %v348 = vpop.f32.mrb[0].mxu0
    %v349 = vpop.f32.mrb[0].mxu0
    %v350 = vadd.f32 %v263, %v349
    %v351 = vpop.f32.mrb[0].mxu0
    %352 = vdwg.mxu0
    %353 = vadd.xlane.f32.xlu0 %v347
    %v354 = vpop.xlane.xlu0 %353
    %355 = vadd.xlane.f32.xlu0 %v350
    %v356 = vpop.xlane.xlu0 %355
    %v357 = vmul.f32 %v354, 0.03125
    %v358 = vmul.f32 %v356, 0.03125
    %v359 = vmul.f32 %v347, %v347
    %v360 = vmul.f32 %v350, %v350
    %361 = vadd.xlane.f32.xlu0 %v359
    %v362 = vpop.xlane.xlu0 %361
    %363 = vadd.xlane.f32.xlu0 %v360
    %v364 = vpop.xlane.xlu0 %363
    %v365 = vmul.f32 %v362, 0.03125
    %v366 = vmul.f32 %v364, 0.03125
    %v367 = vmul.f32 %v357, %v357
    %v368 = vmul.f32 %v358, %v358
    %v369 = vsub.f32 %v365, %v367
    %v370 = vsub.f32 %v366, %v368
    %v371 = vsub.f32 %v347, %v357
    %v372 = vsub.f32 %v350, %v358
    %v373 = vadd.f32 %v369, 1e-05
    %v374 = vadd.f32 %v370, 1e-05
    %v375 = vrsqrt.pop %v373
    %v376 = vrsqrt.pop %v374
    %v377 = vmul.f32 %v371, %v375
    %v378 = vmul.f32 %v372, %v376
    %v379 = vlaneseq
    %v380 = vshrl.u32 %v379, 7
    %v381 = vsub.s32 0, %v380
    %v382 = vrot.slane %v242, %v381
    %v383 = vmul.f32 %v377, %v382
    %v384 = vmul.f32 %v378, %v382
    %v385 = vlaneseq
    %v386 = vshrl.u32 %v385, 7
    %v387 = vsub.s32 0, %v386
    %v388 = vrot.slane %v243, %v387
    %v389 = vadd.f32 %v383, %v388
    %v390 = vadd.f32 %v384, %v388
    %v391 = vmax.f32 %v389, 0.0
    %v392 = vmax.f32 %v390, 0.0
    %v393 = vpack.c.bf16 %v392, %v391
    %v394 = vld [vmem:[#allocation6] sm:$0xf]
    %v395 = vld [vmem:[#allocation6 + $0x4] sm:$0xf]
    %v396 = vld [vmem:[#allocation6 + $0x8] sm:$0xf]
    %v397 = vld [vmem:[#allocation6 + $0xc] sm:$0xf]
    %v398 = vld [vmem:[#allocation6 + $0x10] sm:$0xf]
    %v399 = vld [vmem:[#allocation6 + $0x14] sm:$0xf]
    %v400 = vld [vmem:[#allocation6 + $0x18] sm:$0xf]
    %v401 = vld [vmem:[#allocation6 + $0x1c] sm:$0xf]
    %v402 = vld [vmem:[#allocation6 + $0x20] sm:$0xf]
    %v403 = vld [vmem:[#allocation6 + $0x24] sm:$0xf]
    %v404 = vld [vmem:[#allocation6 + $0x28] sm:$0xf]
    %v405 = vld [vmem:[#allocation6 + $0x2c] sm:$0xf]
    %v406 = vld [vmem:[#allocation6 + $0x30] sm:$0xf]
    %v407 = vld [vmem:[#allocation6 + $0x34] sm:$0xf]
    %v408 = vld [vmem:[#allocation6 + $0x38] sm:$0xf]
    %v409 = vld [vmem:[#allocation6 + $0x3c] sm:$0xf]
    %v410 = vld [vmem:[#allocation7] sm:$0x1]
    %v411 = vlaneseq
    %v412 = vshrl.u32 %v411, 7
    %v413 = vsub.s32 0, %v412
    %v414 = vrot.slane %v410, %v413
    %v431 = vunpack.c.l.b16 %v394
    %v432 = vunpack.c.l.b16 %v395
    %v433 = vunpack.c.l.b16 %v396
    %v434 = vunpack.c.l.b16 %v397
    %v435 = vunpack.c.l.b16 %v398
    %v436 = vunpack.c.l.b16 %v399
    %v437 = vunpack.c.l.b16 %v400
    %v438 = vunpack.c.l.b16 %v401
    %v439 = vunpack.c.l.b16 %v402
    %v440 = vunpack.c.l.b16 %v403
    %v441 = vunpack.c.l.b16 %v404
    %v442 = vunpack.c.l.b16 %v405
    %v443 = vunpack.c.l.b16 %v406
    %v444 = vunpack.c.l.b16 %v407
    %v445 = vunpack.c.l.b16 %v408
    %v446 = vunpack.c.l.b16 %v409
    %v447 = vpack.c.b16 %v432, %v431
    %v448 = vpack.c.b16 %v434, %v433
    %v449 = vpack.c.b16 %v436, %v435
    %v450 = vpack.c.b16 %v438, %v437
    %v451 = vpack.c.b16 %v440, %v439
    %v452 = vpack.c.b16 %v442, %v441
    %v453 = vpack.c.b16 %v444, %v443
    %v454 = vpack.c.b16 %v446, %v445
    %463 = vmatprep.subr.bf16.mxu0 0
    %464 = vmatpush1.bf16.msra.mxu0 %v447
    %465 = vmatprep.subr.bf16.mxu0 0
    %466 = vmatpush1.bf16.msra.mxu0 %v448
    %467 = vmatprep.subr.bf16.mxu0 0
    %468 = vmatpush1.bf16.msra.mxu0 %v449
    %469 = vmatprep.subr.bf16.mxu0 0
    %470 = vmatpush1.bf16.msra.mxu0 %v450
    %471 = vmatprep.subr.bf16.mxu0 0
    %472 = vmatpush1.bf16.msra.mxu0 %v451
    %473 = vmatprep.subr.bf16.mxu0 0
    %474 = vmatpush1.bf16.msra.mxu0 %v452
    %475 = vmatprep.subr.bf16.mxu0 0
    %476 = vmatpush1.bf16.msra.mxu0 %v453
    %477 = vmatprep.subr.bf16.mxu0 0
    %478 = vmatpush1.bf16.msra.mxu0 %v454
    %479 = vmatprep.subr.bf16.mxu0 0
    %480 = vmatpush1.bf16.msra.mxu0 0
    %481 = vmatprep.subr.bf16.mxu0 0
    %482 = vmatpush1.bf16.msra.mxu0 0
    %483 = vmatprep.subr.bf16.mxu0 0
    %484 = vmatpush1.bf16.msra.mxu0 0
    %485 = vmatprep.subr.bf16.mxu0 0
    %486 = vmatpush1.bf16.msra.mxu0 0
    %487 = vmatprep.subr.bf16.mxu0 0
    %488 = vmatpush1.bf16.msra.mxu0 0
    %489 = vmatprep.subr.bf16.mxu0 0
    %490 = vmatpush1.bf16.msra.mxu0 0
    %491 = vmatprep.subr.bf16.mxu0 0
    %492 = vmatpush1.bf16.msra.mxu0 0
    %493 = vmatprep.subr.bf16.mxu0 0
    %494 = vmatpush1.bf16.msra.mxu0 0
    %495 = vmatprep.mubr.bf16.mxu0 0
    %496 = vmatmul.mubr.bf16.gmra.mrb[0].mxu0 %v393
    %v497 = vpop.f32.mrb[0].mxu0
    %v498 = vadd.f32 %v414, %v497
    %v499 = vpop.f32.mrb[0].mxu0
    %v500 = vpop.f32.mrb[0].mxu0
    %v501 = vadd.f32 %v414, %v500
    %v502 = vpop.f32.mrb[0].mxu0
    %503 = vdwg.mxu0
    %504 = vst [vmem:[%s7] sm:$0xff] %v498
    %505 = vst [vmem:[%s7 + $0x8] sm:$0xff] %v501
    // Predicated region
    $region46: #{forward.1} parent=1 // pred_check
      _
    $region47: #{forward.1} parent=1 // pred_check_branch
      %507 = sbr.rel (0) target = $region49
    $region48: #{forward.1} parent=1 // pred_region
      _
    $region49: #{forward.1} parent=1 // pred_fallthru
      _
    // Predicated region
    $region50: #{forward.1} parent=1 // pred_check
      _
    $region51: #{forward.1} parent=1 // pred_check_branch
      %509 = sbr.rel (0) target = $region53
    $region52: #{forward.1} parent=1 // pred_region
      _
    $region53: #{forward.1} parent=1 // pred_fallthru
      _
    %510 = vsyncpa [#allocation3], 1
    %511 = vsyncpa [#allocation5], 1
    %512 = vsyncpa [#allocation8], 1

</llo_original>
